<compile_context>
chip_gen: v5e
topology: v5e:2x2
jax: 0.10.0
libtpu: 0.0.40
codegen_flags: <defaults>
</compile_context>

<pallas_src>
import jax
import jax.numpy as jnp
import numpy as np
from jax.experimental import pallas as pl
from jax.experimental.pallas import tpu as pltpu

EPS = 1e-5
LANE = 128
VMEM_LIMIT_BYTES = 48 * 1024 * 1024   # fits v7x (64 MiB/TC) with headroom


def _round_up(n, m):
    return ((n + m - 1) // m) * m


def _pick_tile(m, preferred):
    """Largest row-tile <= preferred that divides M (multiple of 8)."""
    t = min(preferred, m)
    while t > 8 and m % t != 0:
        t //= 2
    assert m % t == 0, "N*H*W must be a multiple of 8"
    return t


# ---------------------------------------------------------------------------
# Kernel 1: stage-1 1x1 conv (matmul) + BN1 statistics accumulation.
def _matmul_stats_kernel(x_ref, w_ref, y_ref, sum_ref, ssq_ref):
    @pl.when(pl.program_id(0) == 0)
    def _init():
        sum_ref[...] = jnp.zeros_like(sum_ref)
        ssq_ref[...] = jnp.zeros_like(ssq_ref)

    y = jnp.dot(x_ref[...], w_ref[...], preferred_element_type=jnp.float32)
    y_ref[...] = y
    sum_ref[...] += jnp.sum(y, axis=0, keepdims=True)
    ssq_ref[...] += jnp.sum(y * y, axis=0, keepdims=True)


def _matmul_stats(x, w, tm):
    m, k = x.shape
    c = w.shape[1]
    return pl.pallas_call(
        _matmul_stats_kernel,
        out_shape=(jax.ShapeDtypeStruct((m, c), jnp.float32),
                   jax.ShapeDtypeStruct((1, c), jnp.float32),
                   jax.ShapeDtypeStruct((1, c), jnp.float32)),
        grid=(m // tm,),
        in_specs=[pl.BlockSpec((tm, k), lambda i: (i, 0)),
                  pl.BlockSpec((k, c), lambda i: (0, 0))],
        out_specs=(pl.BlockSpec((tm, c), lambda i: (i, 0)),
                   pl.BlockSpec((1, c), lambda i: (0, 0)),
                   pl.BlockSpec((1, c), lambda i: (0, 0))),
        # TODO(synk): per-core partial stats would allow "parallel" here too;
        # the cross-tile sum/ssq reduction forces "arbitrary" for now.
        compiler_params=pltpu.CompilerParams(
            dimension_semantics=("arbitrary",),
            vmem_limit_bytes=VMEM_LIMIT_BYTES),
    )(x, w)


# ---------------------------------------------------------------------------
# Kernel 2: BN1-apply + ReLU fused with the 3x3 conv (9 in-kernel MXU dots
# over a zero-halo VMEM tile) + BN2 statistics accumulation.  Grid over batch.
def _conv3x3_stats_kernel(y1_ref, scale_ref, shift_ref, w2_ref,
                          y2_ref, sum_ref, ssq_ref, hbuf):
    hp, wp, c1 = hbuf.shape
    h_dim, w_dim = hp - 2, wp - 2
    hw = h_dim * w_dim
    c2 = y2_ref.shape[-1]

    @pl.when(pl.program_id(0) == 0)
    def _init():
        sum_ref[...] = jnp.zeros_like(sum_ref)
        ssq_ref[...] = jnp.zeros_like(ssq_ref)
        hbuf[...] = jnp.zeros_like(hbuf)   # zero halo once; scratch persists

    # Stage-1 BN apply + ReLU (f32), cast to bf16 only for the MXU.
    h1 = jnp.maximum(y1_ref[...] * scale_ref[...] + shift_ref[...], 0.0)
    hbuf[1:h_dim + 1, 1:w_dim + 1, :] = (
        h1.reshape(h_dim, w_dim, c1).astype(hbuf.dtype))

    acc = jnp.zeros((hw, c2), jnp.float32)
    for di in range(3):
        for dj in range(3):
            win = hbuf[di:di + h_dim, dj:dj + w_dim, :].reshape(hw, c1)
            acc = acc + jnp.dot(win, w2_ref[di, dj],
                                preferred_element_type=jnp.float32)

    y2_ref[...] = acc
    sum_ref[...] += jnp.sum(acc, axis=0, keepdims=True)
    ssq_ref[...] += jnp.sum(acc * acc, axis=0, keepdims=True)


def _conv3x3_stats(y1, scale1, shift1, w2, n, h, w):
    m, c1 = y1.shape
    c2 = w2.shape[-1]
    hw = h * w
    return pl.pallas_call(
        _conv3x3_stats_kernel,
        out_shape=(jax.ShapeDtypeStruct((m, c2), jnp.float32),
                   jax.ShapeDtypeStruct((1, c2), jnp.float32),
                   jax.ShapeDtypeStruct((1, c2), jnp.float32)),
        grid=(n,),
        in_specs=[pl.BlockSpec((hw, c1), lambda i: (i, 0)),
                  pl.BlockSpec((1, c1), lambda i: (0, 0)),
                  pl.BlockSpec((1, c1), lambda i: (0, 0)),
                  pl.BlockSpec((3, 3, c1, c2), lambda i: (0, 0, 0, 0))],
        out_specs=(pl.BlockSpec((hw, c2), lambda i: (i, 0)),
                   pl.BlockSpec((1, c2), lambda i: (0, 0)),
                   pl.BlockSpec((1, c2), lambda i: (0, 0))),
        scratch_shapes=[pltpu.VMEM((h + 2, w + 2, c1), w2.dtype)],
        compiler_params=pltpu.CompilerParams(
            dimension_semantics=("arbitrary",),
            vmem_limit_bytes=VMEM_LIMIT_BYTES),
    )(y1, scale1, shift1, w2)


# ---------------------------------------------------------------------------
# Kernel 3: BN2-apply + ReLU fused with the 1x1 conv3 matmul + BN3 stats.
def _affine_relu_matmul_stats_kernel(y_in_ref, scale_ref, shift_ref, w_ref,
                                     y_ref, sum_ref, ssq_ref):
    @pl.when(pl.program_id(0) == 0)
    def _init():
        sum_ref[...] = jnp.zeros_like(sum_ref)
        ssq_ref[...] = jnp.zeros_like(ssq_ref)

    h = jnp.maximum(y_in_ref[...] * scale_ref[...] + shift_ref[...], 0.0)
    y = jnp.dot(h.astype(w_ref.dtype), w_ref[...],
                preferred_element_type=jnp.float32)
    y_ref[...] = y
    sum_ref[...] += jnp.sum(y, axis=0, keepdims=True)
    ssq_ref[...] += jnp.sum(y * y, axis=0, keepdims=True)


def _affine_relu_matmul_stats(y_in, scale, shift, w, tm):
    m, k = y_in.shape
    c = w.shape[1]
    return pl.pallas_call(
        _affine_relu_matmul_stats_kernel,
        out_shape=(jax.ShapeDtypeStruct((m, c), jnp.float32),
                   jax.ShapeDtypeStruct((1, c), jnp.float32),
                   jax.ShapeDtypeStruct((1, c), jnp.float32)),
        grid=(m // tm,),
        in_specs=[pl.BlockSpec((tm, k), lambda i: (i, 0)),
                  pl.BlockSpec((1, k), lambda i: (0, 0)),
                  pl.BlockSpec((1, k), lambda i: (0, 0)),
                  pl.BlockSpec((k, c), lambda i: (0, 0))],
        out_specs=(pl.BlockSpec((tm, c), lambda i: (i, 0)),
                   pl.BlockSpec((1, c), lambda i: (0, 0)),
                   pl.BlockSpec((1, c), lambda i: (0, 0))),
        compiler_params=pltpu.CompilerParams(
            dimension_semantics=("arbitrary",),
            vmem_limit_bytes=VMEM_LIMIT_BYTES),
    )(y_in, scale, shift, w)


# ---------------------------------------------------------------------------
# Kernel 4: BN3-apply + identity add + ReLU (pure elementwise, parallel tiles).
def _affine_res_relu_kernel(y_ref, scale_ref, shift_ref, res_ref, o_ref):
    o_ref[...] = jnp.maximum(
        y_ref[...] * scale_ref[...] + shift_ref[...] + res_ref[...], 0.0
    ).astype(o_ref.dtype)


def _affine_res_relu(y, scale, shift, res, tm):
    m, c = y.shape
    return pl.pallas_call(
        _affine_res_relu_kernel,
        out_shape=jax.ShapeDtypeStruct((m, c), jnp.float32),
        grid=(m // tm,),
        in_specs=[pl.BlockSpec((tm, c), lambda i: (i, 0)),
                  pl.BlockSpec((1, c), lambda i: (0, 0)),
                  pl.BlockSpec((1, c), lambda i: (0, 0)),
                  pl.BlockSpec((tm, c), lambda i: (i, 0))],
        out_specs=pl.BlockSpec((tm, c), lambda i: (i, 0)),
        compiler_params=pltpu.CompilerParams(
            dimension_semantics=("parallel",),   # independent row tiles (v7x 2 TCs)
            vmem_limit_bytes=VMEM_LIMIT_BYTES),
    )(y, scale, shift, res)


# ---------------------------------------------------------------------------
def _fold_bn(s, ss, gamma, beta, m_rows):
    """Fold training-mode BN stats into a per-channel scale/shift (tiny)."""
    mean = s / m_rows
    var = jnp.maximum(ss / m_rows - mean * mean, 0.0)   # biased variance
    scale = gamma * jax.lax.rsqrt(var + EPS)
    shift = beta - mean * scale
    return scale, shift


def init_block_params(key, in_channels, out_channels, expansion=4):
    ks = jax.random.split(key, 9)
    # PyTorch conv weight layout: (out, in, kh, kw), bias=False.
    w1 = 0.1 * jax.random.normal(ks[0], (out_channels, in_channels, 1, 1), jnp.float32)
    w2 = 0.1 * jax.random.normal(ks[1], (out_channels, out_channels, 3, 3), jnp.float32)
    w3 = 0.1 * jax.random.normal(
        ks[2], (out_channels * expansion, out_channels, 1, 1), jnp.float32)
    g1 = 1.0 + 0.1 * jax.random.normal(ks[3], (out_channels,), jnp.float32)
    b1 = 0.1 * jax.random.normal(ks[4], (out_channels,), jnp.float32)
    g2 = 1.0 + 0.1 * jax.random.normal(ks[5], (out_channels,), jnp.float32)
    b2 = 0.1 * jax.random.normal(ks[6], (out_channels,), jnp.float32)
    g3 = 1.0 + 0.1 * jax.random.normal(ks[7], (out_channels * expansion,), jnp.float32)
    b3 = 0.1 * jax.random.normal(ks[8], (out_channels * expansion,), jnp.float32)
    return dict(w1=w1, w2=w2, w3=w3, g1=g1, b1=b1, g2=g2, b2=b2, g3=g3, b3=b3)


def block_forward(x_nhwc, p, *, tm_rows=512, compute_dtype=jnp.bfloat16):
    """Pallas-backed forward of Block (i_downsample=None, stride=1), NHWC."""
    n, h, w, cin = x_nhwc.shape
    cout = p["w1"].shape[0]
    cexp = p["w3"].shape[0]
    assert cexp == cin, "identity shortcut requires in_channels == out_channels*4"
    assert w % 8 == 0 and (h * w) % 8 == 0
    # TODO(synk): add spatial (H) tiling with halo DMAs in conv2 for images
    # whose full (H+2)x(W+2)xC tile does not fit VMEM; one image per grid step
    # here.
    m = n * h * w
    tm = _pick_tile(m, tm_rows)

    k1 = _round_up(cin, LANE)     # padded input / identity channels
    c1 = _round_up(cout, LANE)    # padded bottleneck channels
    c3 = k1                       # conv3 output channels == identity channels

    x2d = x_nhwc.reshape(m, cin).astype(jnp.float32)
    x_pad = jnp.pad(x2d, ((0, 0), (0, k1 - cin)))        # f32 identity
    x_mxu = x_pad.astype(compute_dtype)                  # bf16 MXU operand

    # Weights in matmul layout, zero-padded to lane-dense (multiple-of-128)
    # channel counts, cast to the MXU compute dtype.
    w1m = jnp.pad(p["w1"][:, :, 0, 0].T.astype(jnp.float32),
                  ((0, k1 - cin), (0, c1 - cout))).astype(compute_dtype)
    w2m = jnp.pad(jnp.transpose(p["w2"], (2, 3, 1, 0)).astype(jnp.float32),
                  ((0, 0), (0, 0), (0, c1 - cout), (0, c1 - cout))
                  ).astype(compute_dtype)                # (3,3,Cin,Cout) taps
    w3m = jnp.pad(p["w3"][:, :, 0, 0].T.astype(jnp.float32),
                  ((0, c1 - cout), (0, c3 - cexp))).astype(compute_dtype)

    def _padc(v, c):   # zero-padded (1, c) BN params; padded lanes stay 0
        return jnp.pad(v.astype(jnp.float32), (0, c - v.shape[0])).reshape(1, c)

    g1, b1 = _padc(p["g1"], c1), _padc(p["b1"], c1)
    g2, b2 = _padc(p["g2"], c1), _padc(p["b2"], c1)
    g3, b3 = _padc(p["g3"], c3), _padc(p["b3"], c3)

    # Stage 1: 1x1 conv + BN1 statistics.
    y1, s1, q1 = _matmul_stats(x_mxu, w1m, tm)
    scale1, shift1 = _fold_bn(s1, q1, g1, b1, m)

    # Stage 2: BN1-apply + ReLU fused into in-kernel 3x3 conv + BN2 statistics.
    y2, s2, q2 = _conv3x3_stats(y1, scale1, shift1, w2m, n, h, w)
    scale2, shift2 = _fold_bn(s2, q2, g2, b2, m)

    # Stage 3: BN2-apply + ReLU fused into 1x1 conv + BN3 statistics.
    y3, s3, q3 = _affine_relu_matmul_stats(y2, scale2, shift2, w3m, tm)
    scale3, shift3 = _fold_bn(s3, q3, g3, b3, m)

    # Final: BN3-apply + identity add + ReLU.
    out = _affine_res_relu(y3, scale3, shift3, x_pad, tm)
    return out[:, :cexp].reshape(n, h, w, cexp)


def block_forward_reference(x_nhwc, p):
    """Pure-JAX reference mirroring the PyTorch forward (training-mode BN)."""
    def conv(x, w, pad=0):
        return jax.lax.conv_general_dilated(
            x, jnp.transpose(w, (2, 3, 1, 0)),       # OIHW -> HWIO
            window_strides=(1, 1), padding=[(pad, pad), (pad, pad)],
            dimension_numbers=("NHWC", "HWIO", "NHWC"),
            precision=jax.lax.Precision.HIGHEST)

    def bn(x, g, b):
        mean = jnp.mean(x, axis=(0, 1, 2), keepdims=True)
        var = jnp.mean(jnp.square(x - mean), axis=(0, 1, 2), keepdims=True)
        return (x - mean) * jax.lax.rsqrt(var + EPS) * g + b

    identity = x_nhwc
    h = jax.nn.relu(bn(conv(x_nhwc, p["w1"]), p["g1"], p["b1"]))
    h = jax.nn.relu(bn(conv(h, p["w2"], pad=1), p["g2"], p["b2"]))
    h = bn(conv(h, p["w3"]), p["g3"], p["b3"])
    return jax.nn.relu(h + identity)


if __name__ == "__main__":
    key = jax.random.PRNGKey(0)
    kx, kp = jax.random.split(key)

    in_channels, out_channels = 16, 4          # in_channels == out_channels * 4
    N, H, W = 2, 16, 16
    x = jax.random.normal(kx, (N, H, W, in_channels), jnp.float32)  # NHWC
    params = init_block_params(kp, in_channels, out_channels)

    # tm_rows=256 so the toy M=512 problem exercises the multi-tile BN-stat
    # accumulation path (use the 512-1024 default for real workloads).
    out = jax.block_until_ready(block_forward(x, params, tm_rows=256))
    ref = jax.block_until_ready(block_forward_reference(x, params))

    assert out.shape == (N, H, W, in_channels)
    # bf16 MXU operands (f32 accumulation / BN math) -> bf16-level tolerance.
    np.testing.assert_allclose(np.asarray(out), np.asarray(ref),
                               rtol=5e-2, atol=5e-2)
    print("KERNEL_OK")
</pallas_src>

<mosaic_0001>
module attributes {stable_mosaic.version = 11 : i64} {
  func.func @_matmul_stats_kernel(%arg0: i32, %arg1: memref<256x128xbf16, #tpu.memory_space<vmem>>, %arg2: memref<128x128xbf16, #tpu.memory_space<vmem>>, %arg3: memref<256x128xf32, #tpu.memory_space<vmem>>, %arg4: memref<1x128xf32, #tpu.memory_space<vmem>>, %arg5: memref<1x128xf32, #tpu.memory_space<vmem>>) attributes {dimension_semantics = [#tpu.dimension_semantics<arbitrary>], iteration_bounds = array<i64: 2>, scalar_prefetch = 0 : i64, scratch_operands = 0 : i64, tpu.core_type = #tpu.core_type<tc>, window_params = [{transform_indices = @transform_0, window_bounds = array<i64: 256, 128>}, {pipeline_mode = #tpu.pipeline_mode<synchronous>, transform_indices = @transform_1, window_bounds = array<i64: 128, 128>}, {transform_indices = @transform_2, window_bounds = array<i64: 256, 128>}, {pipeline_mode = #tpu.pipeline_mode<synchronous>, transform_indices = @transform_3, window_bounds = array<i64: 1, 128>}, {pipeline_mode = #tpu.pipeline_mode<synchronous>, transform_indices = @transform_4, window_bounds = array<i64: 1, 128>}]} {
    %c0_i32 = arith.constant 0 : i32
    %0 = arith.cmpi eq, %arg0, %c0_i32 : i32
    %1 = arith.extui %0 : i1 to i32
    %c0_i32_0 = arith.constant 0 : i32
    %2 = arith.cmpi ne, %1, %c0_i32_0 : i32
    scf.if %2 {
      %cst_16 = arith.constant 0.000000e+00 : f32
      %18 = vector.broadcast %cst_16 : f32 to vector<1x128xf32>
      %c0_17 = arith.constant 0 : index
      %c0_18 = arith.constant 0 : index
      %19 = vector.load %arg4[%c0_17, %c0_18] : memref<1x128xf32, #tpu.memory_space<vmem>>, vector<1x128xf32>
      tpu.vector_store %arg4[%c0_17, %c0_18], %18 {strides = array<i32>} : memref<1x128xf32, #tpu.memory_space<vmem>>, vector<1x128xf32>,
      %cst_19 = arith.constant 0.000000e+00 : f32
      %20 = vector.broadcast %cst_19 : f32 to vector<1x128xf32>
      %c0_20 = arith.constant 0 : index
      %c0_21 = arith.constant 0 : index
      %21 = vector.load %arg5[%c0_20, %c0_21] : memref<1x128xf32, #tpu.memory_space<vmem>>, vector<1x128xf32>
      tpu.vector_store %arg5[%c0_20, %c0_21], %20 {strides = array<i32>} : memref<1x128xf32, #tpu.memory_space<vmem>>, vector<1x128xf32>,
    } else {
    }
    %c0 = arith.constant 0 : index
    %c0_1 = arith.constant 0 : index
    %3 = vector.load %arg1[%c0, %c0_1] : memref<256x128xbf16, #tpu.memory_space<vmem>>, vector<256x128xbf16>
    %c0_2 = arith.constant 0 : index
    %c0_3 = arith.constant 0 : index
    %4 = vector.load %arg2[%c0_2, %c0_3] : memref<128x128xbf16, #tpu.memory_space<vmem>>, vector<128x128xbf16>
    %cst = arith.constant dense<0.000000e+00> : vector<256x128xf32>
    %5 = tpu.matmul %3, %4, %cst {dimension_numbers = #tpu.dot_dimension_numbers<[1], [0], [0], [1], [0, 0, 1, 1], [], []>} : vector<256x128xbf16>, vector<128x128xbf16>, vector<256x128xf32> -> vector<256x128xf32>
    %c0_4 = arith.constant 0 : index
    %c0_5 = arith.constant 0 : index
    %6 = vector.load %arg3[%c0_4, %c0_5] : memref<256x128xf32, #tpu.memory_space<vmem>>, vector<256x128xf32>
    tpu.vector_store %arg3[%c0_4, %c0_5], %5 {strides = array<i32>} : memref<256x128xf32, #tpu.memory_space<vmem>>, vector<256x128xf32>,
    %c0_6 = arith.constant 0 : index
    %c0_7 = arith.constant 0 : index
    %7 = vector.load %arg4[%c0_6, %c0_7] : memref<1x128xf32, #tpu.memory_space<vmem>>, vector<1x128xf32>
    %cst_8 = arith.constant dense<0.000000e+00> : vector<128xf32>
    %8 = vector.multi_reduction <add>, %5, %cst_8 [0] : vector<256x128xf32> to vector<128xf32>
    %9 = vector.shape_cast %8 : vector<128xf32> to vector<1x128xf32>
    %10 = arith.addf %7, %9 : vector<1x128xf32>
    %c0_9 = arith.constant 0 : index
    %c0_10 = arith.constant 0 : index
    %11 = vector.load %arg4[%c0_9, %c0_10] : memref<1x128xf32, #tpu.memory_space<vmem>>, vector<1x128xf32>
    tpu.vector_store %arg4[%c0_9, %c0_10], %10 {strides = array<i32>} : memref<1x128xf32, #tpu.memory_space<vmem>>, vector<1x128xf32>,
    %c0_11 = arith.constant 0 : index
    %c0_12 = arith.constant 0 : index
    %12 = vector.load %arg5[%c0_11, %c0_12] : memref<1x128xf32, #tpu.memory_space<vmem>>, vector<1x128xf32>
    %13 = arith.mulf %5, %5 : vector<256x128xf32>
    %cst_13 = arith.constant dense<0.000000e+00> : vector<128xf32>
    %14 = vector.multi_reduction <add>, %13, %cst_13 [0] : vector<256x128xf32> to vector<128xf32>
    %15 = vector.shape_cast %14 : vector<128xf32> to vector<1x128xf32>
    %16 = arith.addf %12, %15 : vector<1x128xf32>
    %c0_14 = arith.constant 0 : index
    %c0_15 = arith.constant 0 : index
    %17 = vector.load %arg5[%c0_14, %c0_15] : memref<1x128xf32, #tpu.memory_space<vmem>>, vector<1x128xf32>
    tpu.vector_store %arg5[%c0_14, %c0_15], %16 {strides = array<i32>} : memref<1x128xf32, #tpu.memory_space<vmem>>, vector<1x128xf32>,
    return
  }
  func.func @transform_0(%arg0: i32) -> (i32, i32) {
    %c0_i32 = arith.constant 0 : i32
    %c0_i32_0 = arith.constant 0 : i32
    return %arg0, %c0_i32 : i32, i32
  }
  func.func @transform_1(%arg0: i32) -> (i32, i32) {
    %c0_i32 = arith.constant 0 : i32
    %c0_i32_0 = arith.constant 0 : i32
    %c0_i32_1 = arith.constant 0 : i32
    return %c0_i32, %c0_i32_0 : i32, i32
  }
  func.func @transform_2(%arg0: i32) -> (i32, i32) {
    %c0_i32 = arith.constant 0 : i32
    %c0_i32_0 = arith.constant 0 : i32
    return %arg0, %c0_i32 : i32, i32
  }
  func.func @transform_3(%arg0: i32) -> (i32, i32) {
    %c0_i32 = arith.constant 0 : i32
    %c0_i32_0 = arith.constant 0 : i32
    %c0_i32_1 = arith.constant 0 : i32
    return %c0_i32, %c0_i32_0 : i32, i32
  }
  func.func @transform_4(%arg0: i32) -> (i32, i32) {
    %c0_i32 = arith.constant 0 : i32
    %c0_i32_0 = arith.constant 0 : i32
    %c0_i32_1 = arith.constant 0 : i32
    return %c0_i32, %c0_i32_0 : i32, i32
  }
}

</mosaic_0001>

<llo_original>
// kernel: tpu_custom_call.1
$region0: #{tpu_custom_call.1}
  #allocation0 [shape = 'u32[]', space=smem, size = 0x4, offset = 0x4, fixed_abs, tag = 'smem constant byte address 0x4 - core index']
  #allocation1 [shape = 'u32[72,128]{1,0:T(1,128)}', space=vmem, size = 0x9000, scoped, tag = 'internal scratch']
  %s0 = inlined_call_operand.hbm [shape: bf16[512,128], index: 0, kind: input, shape index: {}]
  %s1 = inlined_call_operand.hbm [shape: bf16[128,128], index: 1, kind: input, shape index: {}]
  %s2 = inlined_call_operand.hbm [shape: f32[512,128], index: 2, kind: output, shape index: {0}]
  %s3 = inlined_call_operand.hbm [shape: f32[1,128], index: 3, kind: output, shape index: {1}]
  %s4 = inlined_call_operand.hbm [shape: f32[1,128], index: 4, kind: output, shape index: {2}]
  %5 = xla_tuple %s2, %s3, %s4
  %s6 = sld [smem:[#allocation0]]
  $region69: #{tpu_custom_call.1} parent=0
    _
  %s8 = ssub.s32 1, %s6
  %s9 = scalar_select 0, %s8, %s6
  $region1: #{tpu_custom_call.1} parent=0
    #allocation2 [shape = 'u8[131072]{0}', space=vmem, size = 0x20000, scoped, tag = 'input window, operand 0']
    #allocation3 [shape = 's32[2]{0}', space=sflag, size = 0x8, scoped, tag = 'scoped memory for tpu_custom_call.1']
    #allocation4 [shape = 's32[2]{0}', space=sflag, size = 0x8, scoped, tag = 'scoped memory for tpu_custom_call.1']
    #allocation5 [shape = 'u8[32768]{0}', space=vmem, size = 0x8000, scoped, tag = 'input window, operand 1, single buffered']
    #allocation6 [shape = 's32[1]{0}', space=sflag, size = 0x4, scoped, tag = 'scoped memory for tpu_custom_call.1']
    #allocation7 [shape = 'u8[262144]{0}', space=vmem, size = 0x40000, scoped, tag = 'output window, operand 0']
    #allocation8 [shape = 'u8[512]{0}', space=vmem, size = 0x400, scoped, tag = 'output window, operand 1, single buffered']
    #allocation9 [shape = 's32[1]{0}', space=sflag, size = 0x4, scoped, tag = 'scoped memory for tpu_custom_call.1']
    #allocation10 [shape = 'u8[512]{0}', space=vmem, size = 0x400, scoped, tag = 'output window, operand 2, single buffered']
    %10 = vsyncpa [#allocation3], 0
    %s11 = scalar_lea.sflag [#allocation3], 1
    %12 = vsyncpa %s11, 0
    %13 = vsyncpa [#allocation6], 0
    %14 = vsyncpa [#allocation4], 0
    %s15 = scalar_lea.sflag [#allocation4], 1
    %16 = vsyncpa %s15, 0
    %17 = vsyncpa [#allocation9], 0
    loop: start=0, step=1, limit=4
    $region2: #{tpu_custom_call.1} parent=1 // loop_pre_header
      _
    $region3: #{tpu_custom_call.1} parent=1 // loop_header
      %s19 = sphi 0, %s23
      %p20 = scmp.ge.s32.totalorder %s19, 4
      %s29 = sphi 0, %s31
      %s32 = sphi 0, %s29
      %s33 = sphi 0, %s32
      %s49 = sphi 0, %s33
      %s53 = sphi 0, %s53
      %s55 = sphi 0, %s53
      %s56 = sphi 0, %s55
      %s70 = sphi 0, %s56
      %s76 = sphi 0, %s78
      %s79 = sphi 0, %s76
      %s80 = sphi 0, %s79
      %s96 = sphi 0, %s80
      %s100 = sphi 0, %s100
      %s102 = sphi 0, %s100
      %s103 = sphi 0, %s102
      %s117 = sphi 0, %s103
      %s121 = sphi 0, %s121
      %s123 = sphi 0, %s121
      %s124 = sphi 0, %s123
      %s138 = sphi 0, %s124
    $region4: #{tpu_custom_call.1} parent=1 // loop_header_branch
      %22 = sbr.rel (%p20) target = $region8
    $region5: #{tpu_custom_call.1} parent=1 // loop_body
      %s24 = ssub.s32 %s19, 1
      %s25 = ssub.s32 %s19, 2
      %s26 = sadd.s32 %s19, 1
      %s27 = ssub.s32 %s19, %s26
      %p28 = scmp.eq.s32.totalorder %s27, 0
      %s30 = sadd.s32 %s29, 1
      %s31 = scalar_select %p28, %s29, %s30
      %p34 = pneg %p28
      %p35 = scmp.eq.s32.totalorder %s19, 1
      %p36 = por %p34, %p35
      %p37 = scmp.ne.s32.totalorder %s29, %s32
      %p38 = scmp.eq.s32.totalorder %s19, 0
      %p39 = por %p37, %p38
      %p40 = scmp.ne.s32.totalorder %s29, %s32
      %p41 = scmp.eq.s32.totalorder %s24, 1
      %p42 = por %p40, %p41
      %p43 = scmp.ne.s32.totalorder %s32, %s33
      %p44 = scmp.eq.s32.totalorder %s24, 0
      %p45 = por %p43, %p44
      %p46 = scmp.ne.s32.totalorder %s32, %s33
      %p47 = scmp.eq.s32.totalorder %s25, 1
      %p48 = por %p46, %p47
      %p50 = scmp.ne.s32.totalorder %s33, %s49
      %p51 = scmp.eq.s32.totalorder %s25, 0
      %p52 = por %p50, %p51
      %s54 = sadd.s32 %s53, 1
      %p57 = scmp.eq.s32.totalorder %s19, 1
      %p58 = scmp.ne.s32.totalorder %s53, %s55
      %p59 = scmp.eq.s32.totalorder %s19, 0
      %p60 = por %p58, %p59
      %p61 = scmp.ne.s32.totalorder %s53, %s55
      %p62 = scmp.eq.s32.totalorder %s24, 1
      %p63 = por %p61, %p62
      %p64 = scmp.ne.s32.totalorder %s55, %s56
      %p65 = scmp.eq.s32.totalorder %s24, 0
      %p66 = por %p64, %p65
      %p67 = scmp.ne.s32.totalorder %s55, %s56
      %p68 = scmp.eq.s32.totalorder %s25, 1
      %p69 = por %p67, %p68
      %p71 = scmp.ne.s32.totalorder %s56, %s70
      %p72 = scmp.eq.s32.totalorder %s25, 0
      %p73 = por %p71, %p72
      %s74 = ssub.s32 %s19, %s26
      %p75 = scmp.eq.s32.totalorder %s74, 0
      %s77 = sadd.s32 %s76, 1
      %s78 = scalar_select %p75, %s76, %s77
      %p81 = pneg %p75
      %p82 = scmp.eq.s32.totalorder %s19, 1
      %p83 = por %p81, %p82
      %p84 = scmp.ne.s32.totalorder %s76, %s79
      %p85 = scmp.eq.s32.totalorder %s19, 0
      %p86 = por %p84, %p85
      %p87 = scmp.ne.s32.totalorder %s76, %s79
      %p88 = scmp.eq.s32.totalorder %s24, 1
      %p89 = por %p87, %p88
      %p90 = scmp.ne.s32.totalorder %s79, %s80
      %p91 = scmp.eq.s32.totalorder %s24, 0
      %p92 = por %p90, %p91
      %p93 = scmp.ne.s32.totalorder %s79, %s80
      %p94 = scmp.eq.s32.totalorder %s25, 1
      %p95 = por %p93, %p94
      %p97 = scmp.ne.s32.totalorder %s80, %s96
      %p98 = scmp.eq.s32.totalorder %s25, 0
      %p99 = por %p97, %p98
      %s101 = sadd.s32 %s100, 1
      %p104 = scmp.eq.s32.totalorder %s19, 1
      %p105 = scmp.ne.s32.totalorder %s100, %s102
      %p106 = scmp.eq.s32.totalorder %s19, 0
      %p107 = por %p105, %p106
      %p108 = scmp.ne.s32.totalorder %s100, %s102
      %p109 = scmp.eq.s32.totalorder %s24, 1
      %p110 = por %p108, %p109
      %p111 = scmp.ne.s32.totalorder %s102, %s103
      %p112 = scmp.eq.s32.totalorder %s24, 0
      %p113 = por %p111, %p112
      %p114 = scmp.ne.s32.totalorder %s102, %s103
      %p115 = scmp.eq.s32.totalorder %s25, 1
      %p116 = por %p114, %p115
      %p118 = scmp.ne.s32.totalorder %s103, %s117
      %p119 = scmp.eq.s32.totalorder %s25, 0
      %p120 = por %p118, %p119
      %s122 = sadd.s32 %s121, 1
      %p125 = scmp.eq.s32.totalorder %s19, 1
      %p126 = scmp.ne.s32.totalorder %s121, %s123
      %p127 = scmp.eq.s32.totalorder %s19, 0
      %p128 = por %p126, %p127
      %p129 = scmp.ne.s32.totalorder %s121, %s123
      %p130 = scmp.eq.s32.totalorder %s24, 1
      %p131 = por %p129, %p130
      %p132 = scmp.ne.s32.totalorder %s123, %s124
      %p133 = scmp.eq.s32.totalorder %s24, 0
      %p134 = por %p132, %p133
      %p135 = scmp.ne.s32.totalorder %s123, %s124
      %p136 = scmp.eq.s32.totalorder %s25, 1
      %p137 = por %p135, %p136
      %p139 = scmp.ne.s32.totalorder %s124, %s138
      %p140 = scmp.eq.s32.totalorder %s25, 0
      %p141 = por %p139, %p140
      %p142 = scmp.le.s32.totalorder 1, %s19
      %p143 = scmp.lt.s32.totalorder %s19, 3
      %p144 = pnand %p142, %p143
      %p145 = pneg %p144
      // Predicated region
      $region9: #{tpu_custom_call.1} parent=5 // pred_check
        _
      $region10: #{tpu_custom_call.1} parent=5 // pred_check_branch
        %147 = sbr.rel (%p144) target = $region12
      $region11: #{tpu_custom_call.1} parent=5 // pred_region
        %s148 = ssub.s32 %s19, 1
        // Predicated region
        $region13: #{tpu_custom_call.1} parent=11 // pred_check
          %p149 = pneg %p66
        $region14: #{tpu_custom_call.1} parent=11 // pred_check_branch
          %151 = sbr.rel (%p149) target = $region16
        $region15: #{tpu_custom_call.1} parent=11 // pred_region
          %153 = vsyncadd [#allocation6], 0
          %s154 = sshll.u32 %s1, 4
          %s155 = int_to_ptr.hbm [resolvable:$true] %s154
          %s156 = sshll.u32 [#allocation5], 4
          %s157 = int_to_ptr.vmem [resolvable:$true] %s156
          %162 = dma.hbm_to_vmem [thread:$0]  %s155, 1024, %s157, [#allocation6], 64, 64, 4
        $region16: #{tpu_custom_call.1} parent=11 // pred_fallthru
          _
      $region12: #{tpu_custom_call.1} parent=5 // pred_fallthru
        _
      %p163 = scmp.lt.s32.totalorder %s19, 2
      // Predicated region
      $region17: #{tpu_custom_call.1} parent=5 // pred_check
        %p164 = pneg %p163
      $region18: #{tpu_custom_call.1} parent=5 // pred_check_branch
        %166 = sbr.rel (%p164) target = $region20
      $region19: #{tpu_custom_call.1} parent=5 // pred_region
        // Predicated region
        $region21: #{tpu_custom_call.1} parent=19 // pred_check
          %p167 = pneg %p39
        $region22: #{tpu_custom_call.1} parent=19 // pred_check_branch
          %169 = sbr.rel (%p167) target = $region24
        $region23: #{tpu_custom_call.1} parent=19 // pred_region
          %s170 = sand.u32 %s29, 1
          %s171 = scalar_lea.sflag [#allocation3], %s170
          %s172 = sand.u32 %s29, 1
          %s173 = smul.addr %s172, 128
          %s174 = scalar_lea.vmem [#allocation2], %s173
          %s175 = smul.u32 32, %s19
          %177 = vsyncadd %s171, 0
          %s178 = smul.addr %s175, 4
          %s179 = scalar_lea.hbm %s0, %s178
          %s180 = sshll.u32 %s179, 4
          %s181 = int_to_ptr.hbm [resolvable:$true] %s180
          %s182 = sshll.u32 %s174, 4
          %s183 = int_to_ptr.vmem [resolvable:$true] %s182
          %188 = dma.hbm_to_vmem [thread:$0]  %s181, 2048, %s183, %s171, 64, 64, 4
        $region24: #{tpu_custom_call.1} parent=19 // pred_fallthru
          _
      $region20: #{tpu_custom_call.1} parent=5 // pred_fallthru
        _
      %p189 = scmp.le.s32.totalorder 1, %s19
      %p190 = scmp.lt.s32.totalorder %s19, 3
      %p191 = pnand %p189, %p190
      %p192 = pneg %p191
      // Predicated region
      $region25: #{tpu_custom_call.1} parent=5 // pred_check
        _
      $region26: #{tpu_custom_call.1} parent=5 // pred_check_branch
        %194 = sbr.rel (%p191) target = $region28
      $region27: #{tpu_custom_call.1} parent=5 // pred_region
        %s195 = ssub.s32 %s19, 1
        %s196 = sand.u32 %s32, 1
        %s197 = scalar_lea.sflag [#allocation3], %s196
        %s198 = sand.u32 %s32, 1
        %s199 = smul.addr %s198, 128
        %s200 = scalar_lea.vmem [#allocation2], %s199
        // Predicated region
        $region29: #{tpu_custom_call.1} parent=27 // pred_check
          %p201 = pneg %p45
        $region30: #{tpu_custom_call.1} parent=27 // pred_check_branch
          %203 = sbr.rel (%p201) target = $region32
        $region31: #{tpu_custom_call.1} parent=27 // pred_region
          %205 = dma.done %s197, 2048
        $region32: #{tpu_custom_call.1} parent=27 // pred_fallthru
          _
        // Predicated region
        $region33: #{tpu_custom_call.1} parent=27 // pred_check
          %p206 = pneg %p66
        $region34: #{tpu_custom_call.1} parent=27 // pred_check_branch
          %208 = sbr.rel (%p206) target = $region36
        $region35: #{tpu_custom_call.1} parent=27 // pred_region
          %210 = dma.done [#allocation6], 1024
        $region36: #{tpu_custom_call.1} parent=27 // pred_fallthru
          _
        %s211 = sand.u32 %s32, 1
        %s212 = scalar_lea.sflag [#allocation3], %s211
        %s213 = sand.u32 %s32, 1
        %s214 = smul.addr %s213, 128
        %s215 = scalar_lea.vmem [#allocation2], %s214
        %p216 = pneg %p45
        %p217 = pneg %p42
        %p218 = pneg %p66
        %p219 = pneg %p63
        %p220 = pneg %p92
        %p221 = pneg %p89
        %s222 = sand.u32 %s79, 1
        %s223 = scalar_lea.sflag [#allocation4], %s222
        %s224 = sand.u32 %s79, 1
        %s225 = smul.addr %s224, 256
        %s226 = scalar_lea.vmem [#allocation7], %s225
        %p227 = pneg %p113
        %p228 = pneg %p110
        %p229 = pneg %p134
        %p230 = pneg %p131
        %s231 = smul.u32 32, %s24
        %s232 = smul.u32 32, %s24
        %p233 = scmp.eq.s32.totalorder %s24, 0
        // Predicated region
        $region37: #{tpu_custom_call.1} parent=27 // pred_check
          %p234 = pneg %p233
        $region38: #{tpu_custom_call.1} parent=27 // pred_check_branch
          %236 = sbr.rel (%p234) target = $region40
        $region39: #{tpu_custom_call.1} parent=27 // pred_region
          %237 = vst [vmem:[#allocation8] sm:$0x1] 0.0
          %238 = vst [vmem:[#allocation10] sm:$0x1] 0.0
        $region40: #{tpu_custom_call.1} parent=27 // pred_fallthru
          _
        %v239 = vld [vmem:[%s200] sm:$0xf]
        %v240 = vld [vmem:[%s200 + $0x4] sm:$0xf]
        %v241 = vld [vmem:[%s200 + $0x8] sm:$0xf]
        %v242 = vld [vmem:[%s200 + $0xc] sm:$0xf]
        %v243 = vld [vmem:[%s200 + $0x10] sm:$0xf]
        %v244 = vld [vmem:[%s200 + $0x14] sm:$0xf]
        %v245 = vld [vmem:[%s200 + $0x18] sm:$0xf]
        %v246 = vld [vmem:[%s200 + $0x1c] sm:$0xf]
        %v247 = vld [vmem:[%s200 + $0x20] sm:$0xf]
        %v248 = vld [vmem:[%s200 + $0x24] sm:$0xf]
        %v249 = vld [vmem:[%s200 + $0x28] sm:$0xf]
        %v250 = vld [vmem:[%s200 + $0x2c] sm:$0xf]
        %v251 = vld [vmem:[%s200 + $0x30] sm:$0xf]
        %v252 = vld [vmem:[%s200 + $0x34] sm:$0xf]
        %v253 = vld [vmem:[%s200 + $0x38] sm:$0xf]
        %v254 = vld [vmem:[%s200 + $0x3c] sm:$0xf]
        %v255 = vld [vmem:[%s200 + $0x40] sm:$0xf]
        %v256 = vld [vmem:[%s200 + $0x44] sm:$0xf]
        %v257 = vld [vmem:[%s200 + $0x48] sm:$0xf]
        %v258 = vld [vmem:[%s200 + $0x4c] sm:$0xf]
        %v259 = vld [vmem:[%s200 + $0x50] sm:$0xf]
        %v260 = vld [vmem:[%s200 + $0x54] sm:$0xf]
        %v261 = vld [vmem:[%s200 + $0x58] sm:$0xf]
        %v262 = vld [vmem:[%s200 + $0x5c] sm:$0xf]
        %v263 = vld [vmem:[%s200 + $0x60] sm:$0xf]
        %v264 = vld [vmem:[%s200 + $0x64] sm:$0xf]
        %v265 = vld [vmem:[%s200 + $0x68] sm:$0xf]
        %v266 = vld [vmem:[%s200 + $0x6c] sm:$0xf]
        %v267 = vld [vmem:[%s200 + $0x70] sm:$0xf]
        %v268 = vld [vmem:[%s200 + $0x74] sm:$0xf]
        %v269 = vld [vmem:[%s200 + $0x78] sm:$0xf]
        %v270 = vld [vmem:[%s200 + $0x7c] sm:$0xf]
        %v271 = vld [vmem:[#allocation5] sm:$0xf]
        %v272 = vld [vmem:[#allocation5 + $0x4] sm:$0xf]
        %v273 = vld [vmem:[#allocation5 + $0x8] sm:$0xf]
        %v274 = vld [vmem:[#allocation5 + $0xc] sm:$0xf]
        %v275 = vld [vmem:[#allocation5 + $0x10] sm:$0xf]
        %v276 = vld [vmem:[#allocation5 + $0x14] sm:$0xf]
        %v277 = vld [vmem:[#allocation5 + $0x18] sm:$0xf]
        %v278 = vld [vmem:[#allocation5 + $0x1c] sm:$0xf]
        %v279 = vld [vmem:[#allocation5 + $0x20] sm:$0xf]
        %v280 = vld [vmem:[#allocation5 + $0x24] sm:$0xf]
        %v281 = vld [vmem:[#allocation5 + $0x28] sm:$0xf]
        %v282 = vld [vmem:[#allocation5 + $0x2c] sm:$0xf]
        %v283 = vld [vmem:[#allocation5 + $0x30] sm:$0xf]
        %v284 = vld [vmem:[#allocation5 + $0x34] sm:$0xf]
        %v285 = vld [vmem:[#allocation5 + $0x38] sm:$0xf]
        %v286 = vld [vmem:[#allocation5 + $0x3c] sm:$0xf]
        %v319 = vunpack.c.l.b16 %v239
        %v320 = vunpack.c.l.b16 %v240
        %v321 = vunpack.c.l.b16 %v241
        %v322 = vunpack.c.l.b16 %v242
        %v323 = vunpack.c.l.b16 %v243
        %v324 = vunpack.c.l.b16 %v244
        %v325 = vunpack.c.l.b16 %v245
        %v326 = vunpack.c.l.b16 %v246
        %v327 = vunpack.c.l.b16 %v247
        %v328 = vunpack.c.l.b16 %v248
        %v329 = vunpack.c.l.b16 %v249
        %v330 = vunpack.c.l.b16 %v250
        %v331 = vunpack.c.l.b16 %v251
        %v332 = vunpack.c.l.b16 %v252
        %v333 = vunpack.c.l.b16 %v253
        %v334 = vunpack.c.l.b16 %v254
        %v335 = vunpack.c.l.b16 %v255
        %v336 = vunpack.c.l.b16 %v256
        %v337 = vunpack.c.l.b16 %v257
        %v338 = vunpack.c.l.b16 %v258
        %v339 = vunpack.c.l.b16 %v259
        %v340 = vunpack.c.l.b16 %v260
        %v341 = vunpack.c.l.b16 %v261
        %v342 = vunpack.c.l.b16 %v262
        %v343 = vunpack.c.l.b16 %v263
        %v344 = vunpack.c.l.b16 %v264
        %v345 = vunpack.c.l.b16 %v265
        %v346 = vunpack.c.l.b16 %v266
        %v347 = vunpack.c.l.b16 %v267
        %v348 = vunpack.c.l.b16 %v268
        %v349 = vunpack.c.l.b16 %v269
        %v350 = vunpack.c.l.b16 %v270
        %v351 = vpack.c.b16 %v320, %v319
        %v352 = vpack.c.b16 %v322, %v321
        %v353 = vpack.c.b16 %v324, %v323
        %v354 = vpack.c.b16 %v326, %v325
        %v355 = vpack.c.b16 %v328, %v327
        %v356 = vpack.c.b16 %v330, %v329
        %v357 = vpack.c.b16 %v332, %v331
        %v358 = vpack.c.b16 %v334, %v333
        %v359 = vpack.c.b16 %v336, %v335
        %v360 = vpack.c.b16 %v338, %v337
        %v361 = vpack.c.b16 %v340, %v339
        %v362 = vpack.c.b16 %v342, %v341
        %v363 = vpack.c.b16 %v344, %v343
        %v364 = vpack.c.b16 %v346, %v345
        %v365 = vpack.c.b16 %v348, %v347
        %v366 = vpack.c.b16 %v350, %v349
        %v399 = vunpack.c.l.b16 %v271
        %v400 = vunpack.c.l.b16 %v272
        %v401 = vunpack.c.l.b16 %v273
        %v402 = vunpack.c.l.b16 %v274
        %v403 = vunpack.c.l.b16 %v275
        %v404 = vunpack.c.l.b16 %v276
        %v405 = vunpack.c.l.b16 %v277
        %v406 = vunpack.c.l.b16 %v278
        %v407 = vunpack.c.l.b16 %v279
        %v408 = vunpack.c.l.b16 %v280
        %v409 = vunpack.c.l.b16 %v281
        %v410 = vunpack.c.l.b16 %v282
        %v411 = vunpack.c.l.b16 %v283
        %v412 = vunpack.c.l.b16 %v284
        %v413 = vunpack.c.l.b16 %v285
        %v414 = vunpack.c.l.b16 %v286
        %v415 = vpack.c.b16 %v400, %v399
        %v416 = vpack.c.b16 %v402, %v401
        %v417 = vpack.c.b16 %v404, %v403
        %v418 = vpack.c.b16 %v406, %v405
        %v419 = vpack.c.b16 %v408, %v407
        %v420 = vpack.c.b16 %v410, %v409
        %v421 = vpack.c.b16 %v412, %v411
        %v422 = vpack.c.b16 %v414, %v413
        %431 = vmatpush.bf16.msra.mxu0 %v422
        %432 = vmatpush.bf16.msra.mxu0 %v421
        %433 = vmatpush.bf16.msra.mxu0 %v420
        %434 = vmatpush.bf16.msra.mxu0 %v419
        %435 = vmatpush.bf16.msra.mxu0 %v418
        %436 = vmatpush.bf16.msra.mxu0 %v417
        %437 = vmatpush.bf16.msra.mxu0 %v416
        %438 = vmatpush.bf16.msra.mxu0 %v415
        %439 = vmatmul.bf16.gmra.mxu0 %v351
        %v440 = vpop.f32.mrf.mxu0
        %v441 = vadd.f32 0.0, %v440
        %v442 = vpop.f32.mrf.mxu0
        %v443 = vadd.f32 0.0, %v442
        %444 = vmatmul.bf16.gmra.mxu0 %v352
        %v445 = vpop.f32.mrf.mxu0
        %v446 = vadd.f32 0.0, %v445
        %v447 = vpop.f32.mrf.mxu0
        %v448 = vadd.f32 0.0, %v447
        %449 = vmatmul.bf16.gmra.mxu0 %v353
        %v450 = vpop.f32.mrf.mxu0
        %v451 = vadd.f32 0.0, %v450
        %v452 = vpop.f32.mrf.mxu0
        %v453 = vadd.f32 0.0, %v452
        %454 = vmatmul.bf16.gmra.mxu0 %v354
        %v455 = vpop.f32.mrf.mxu0
        %v456 = vadd.f32 0.0, %v455
        %v457 = vpop.f32.mrf.mxu0
        %v458 = vadd.f32 0.0, %v457
        %459 = vmatmul.bf16.gmra.mxu0 %v355
        %v460 = vpop.f32.mrf.mxu0
        %v461 = vadd.f32 0.0, %v460
        %v462 = vpop.f32.mrf.mxu0
        %v463 = vadd.f32 0.0, %v462
        %464 = vmatmul.bf16.gmra.mxu0 %v356
        %v465 = vpop.f32.mrf.mxu0
        %v466 = vadd.f32 0.0, %v465
        %v467 = vpop.f32.mrf.mxu0
        %v468 = vadd.f32 0.0, %v467
        %469 = vmatmul.bf16.gmra.mxu0 %v357
        %v470 = vpop.f32.mrf.mxu0
        %v471 = vadd.f32 0.0, %v470
        %v472 = vpop.f32.mrf.mxu0
        %v473 = vadd.f32 0.0, %v472
        %474 = vmatmul.bf16.gmra.mxu0 %v358
        %v475 = vpop.f32.mrf.mxu0
        %v476 = vadd.f32 0.0, %v475
        %v477 = vpop.f32.mrf.mxu0
        %v478 = vadd.f32 0.0, %v477
        %479 = vmatmul.bf16.gmra.mxu0 %v359
        %v480 = vpop.f32.mrf.mxu0
        %v481 = vadd.f32 0.0, %v480
        %v482 = vpop.f32.mrf.mxu0
        %v483 = vadd.f32 0.0, %v482
        %484 = vmatmul.bf16.gmra.mxu0 %v360
        %v485 = vpop.f32.mrf.mxu0
        %v486 = vadd.f32 0.0, %v485
        %v487 = vpop.f32.mrf.mxu0
        %v488 = vadd.f32 0.0, %v487
        %489 = vmatmul.bf16.gmra.mxu0 %v361
        %v490 = vpop.f32.mrf.mxu0
        %v491 = vadd.f32 0.0, %v490
        %v492 = vpop.f32.mrf.mxu0
        %v493 = vadd.f32 0.0, %v492
        %494 = vmatmul.bf16.gmra.mxu0 %v362
        %v495 = vpop.f32.mrf.mxu0
        %v496 = vadd.f32 0.0, %v495
        %v497 = vpop.f32.mrf.mxu0
        %v498 = vadd.f32 0.0, %v497
        %499 = vmatmul.bf16.gmra.mxu0 %v363
        %v500 = vpop.f32.mrf.mxu0
        %v501 = vadd.f32 0.0, %v500
        %v502 = vpop.f32.mrf.mxu0
        %v503 = vadd.f32 0.0, %v502
        %504 = vmatmul.bf16.gmra.mxu0 %v364
        %v505 = vpop.f32.mrf.mxu0
        %v506 = vadd.f32 0.0, %v505
        %v507 = vpop.f32.mrf.mxu0
        %v508 = vadd.f32 0.0, %v507
        %509 = vmatmul.bf16.gmra.mxu0 %v365
        %v510 = vpop.f32.mrf.mxu0
        %v511 = vadd.f32 0.0, %v510
        %v512 = vpop.f32.mrf.mxu0
        %v513 = vadd.f32 0.0, %v512
        %514 = vmatmul.bf16.gmra.mxu0 %v366
        %v515 = vpop.f32.mrf.mxu0
        %v516 = vadd.f32 0.0, %v515
        %v517 = vpop.f32.mrf.mxu0
        %v518 = vadd.f32 0.0, %v517
        %519 = vdwg.mxu0
        %520 = vst [vmem:[%s226] sm:$0xff] %v441
        %521 = vst [vmem:[%s226 + $0x8] sm:$0xff] %v443
        %522 = vst [vmem:[%s226 + $0x10] sm:$0xff] %v446
        %523 = vst [vmem:[%s226 + $0x18] sm:$0xff] %v448
        %524 = vst [vmem:[%s226 + $0x20] sm:$0xff] %v451
        %525 = vst [vmem:[%s226 + $0x28] sm:$0xff] %v453
        %526 = vst [vmem:[%s226 + $0x30] sm:$0xff] %v456
        %527 = vst [vmem:[%s226 + $0x38] sm:$0xff] %v458
        %528 = vst [vmem:[%s226 + $0x40] sm:$0xff] %v461
        %529 = vst [vmem:[%s226 + $0x48] sm:$0xff] %v463
        %530 = vst [vmem:[%s226 + $0x50] sm:$0xff] %v466
        %531 = vst [vmem:[%s226 + $0x58] sm:$0xff] %v468
        %532 = vst [vmem:[%s226 + $0x60] sm:$0xff] %v471
        %533 = vst [vmem:[%s226 + $0x68] sm:$0xff] %v473
        %534 = vst [vmem:[%s226 + $0x70] sm:$0xff] %v476
        %535 = vst [vmem:[%s226 + $0x78] sm:$0xff] %v478
        %536 = vst [vmem:[%s226 + $0x80] sm:$0xff] %v481
        %537 = vst [vmem:[%s226 + $0x88] sm:$0xff] %v483
        %538 = vst [vmem:[%s226 + $0x90] sm:$0xff] %v486
        %539 = vst [vmem:[%s226 + $0x98] sm:$0xff] %v488
        %540 = vst [vmem:[%s226 + $0xa0] sm:$0xff] %v491
        %541 = vst [vmem:[%s226 + $0xa8] sm:$0xff] %v493
        %542 = vst [vmem:[%s226 + $0xb0] sm:$0xff] %v496
        %543 = vst [vmem:[%s226 + $0xb8] sm:$0xff] %v498
        %544 = vst [vmem:[%s226 + $0xc0] sm:$0xff] %v501
        %545 = vst [vmem:[%s226 + $0xc8] sm:$0xff] %v503
        %546 = vst [vmem:[%s226 + $0xd0] sm:$0xff] %v506
        %547 = vst [vmem:[%s226 + $0xd8] sm:$0xff] %v508
        %548 = vst [vmem:[%s226 + $0xe0] sm:$0xff] %v511
        %549 = vst [vmem:[%s226 + $0xe8] sm:$0xff] %v513
        %550 = vst [vmem:[%s226 + $0xf0] sm:$0xff] %v516
        %551 = vst [vmem:[%s226 + $0xf8] sm:$0xff] %v518
        %v552 = vld [vmem:[#allocation8] sm:$0x1]
        %v553 = vadd.f32 %v441, %v443
        %v554 = vadd.f32 %v553, %v446
        %v555 = vadd.f32 %v554, %v448
        %v556 = vadd.f32 %v555, %v451
        %v557 = vadd.f32 %v556, %v453
        %v558 = vadd.f32 %v557, %v456
        %v559 = vadd.f32 %v558, %v458
        %v560 = vadd.f32 %v559, %v461
        %v561 = vadd.f32 %v560, %v463
        %v562 = vadd.f32 %v561, %v466
        %v563 = vadd.f32 %v562, %v468
        %v564 = vadd.f32 %v563, %v471
        %v565 = vadd.f32 %v564, %v473
        %v566 = vadd.f32 %v565, %v476
        %v567 = vadd.f32 %v566, %v478
        %v568 = vadd.f32 %v567, %v481
        %v569 = vadd.f32 %v568, %v483
        %v570 = vadd.f32 %v569, %v486
        %v571 = vadd.f32 %v570, %v488
        %v572 = vadd.f32 %v571, %v491
        %v573 = vadd.f32 %v572, %v493
        %v574 = vadd.f32 %v573, %v496
        %v575 = vadd.f32 %v574, %v498
        %v576 = vadd.f32 %v575, %v501
        %v577 = vadd.f32 %v576, %v503
        %v578 = vadd.f32 %v577, %v506
        %v579 = vadd.f32 %v578, %v508
        %v580 = vadd.f32 %v579, %v511
        %v581 = vadd.f32 %v580, %v513
        %v582 = vadd.f32 %v581, %v516
        %v583 = vadd.f32 %v582, %v518
        %v584 = vrot.slane %v583, 4
        %v585 = vadd.f32 %v583, %v584
        %v586 = vrot.slane %v585, 2
        %v587 = vadd.f32 %v585, %v586
        %v588 = vrot.slane %v587, 1
        %v589 = vadd.f32 %v587, %v588
        %v590 = vadd.f32 %v552, %v589
        %591 = vst [vmem:[#allocation8] sm:$0x1] %v590
        %v592 = vld [vmem:[#allocation10] sm:$0x1]
        %v593 = vmul.f32 %v441, %v441
        %v594 = vmul.f32 %v443, %v443
        %v595 = vmul.f32 %v446, %v446
        %v596 = vmul.f32 %v448, %v448
        %v597 = vmul.f32 %v451, %v451
        %v598 = vmul.f32 %v453, %v453
        %v599 = vmul.f32 %v456, %v456
        %v600 = vmul.f32 %v458, %v458
        %v601 = vmul.f32 %v461, %v461
        %v602 = vmul.f32 %v463, %v463
        %v603 = vmul.f32 %v466, %v466
        %v604 = vmul.f32 %v468, %v468
        %v605 = vmul.f32 %v471, %v471
        %v606 = vmul.f32 %v473, %v473
        %v607 = vmul.f32 %v476, %v476
        %v608 = vmul.f32 %v478, %v478
        %v609 = vmul.f32 %v481, %v481
        %v610 = vmul.f32 %v483, %v483
        %v611 = vmul.f32 %v486, %v486
        %v612 = vmul.f32 %v488, %v488
        %v613 = vmul.f32 %v491, %v491
        %v614 = vmul.f32 %v493, %v493
        %v615 = vmul.f32 %v496, %v496
        %v616 = vmul.f32 %v498, %v498
        %v617 = vmul.f32 %v501, %v501
        %v618 = vmul.f32 %v503, %v503
        %v619 = vmul.f32 %v506, %v506
        %v620 = vmul.f32 %v508, %v508
        %v621 = vmul.f32 %v511, %v511
        %v622 = vmul.f32 %v513, %v513
        %v623 = vmul.f32 %v516, %v516
        %v624 = vmul.f32 %v518, %v518
        %v625 = vadd.f32 %v593, %v594
        %v626 = vadd.f32 %v625, %v595
        %v627 = vadd.f32 %v626, %v596
        %v628 = vadd.f32 %v627, %v597
        %v629 = vadd.f32 %v628, %v598
        %v630 = vadd.f32 %v629, %v599
        %v631 = vadd.f32 %v630, %v600
        %v632 = vadd.f32 %v631, %v601
        %v633 = vadd.f32 %v632, %v602
        %v634 = vadd.f32 %v633, %v603
        %v635 = vadd.f32 %v634, %v604
        %v636 = vadd.f32 %v635, %v605
        %v637 = vadd.f32 %v636, %v606
        %v638 = vadd.f32 %v637, %v607
        %v639 = vadd.f32 %v638, %v608
        %v640 = vadd.f32 %v639, %v609
        %v641 = vadd.f32 %v640, %v610
        %v642 = vadd.f32 %v641, %v611
        %v643 = vadd.f32 %v642, %v612
        %v644 = vadd.f32 %v643, %v613
        %v645 = vadd.f32 %v644, %v614
        %v646 = vadd.f32 %v645, %v615
        %v647 = vadd.f32 %v646, %v616
        %v648 = vadd.f32 %v647, %v617
        %v649 = vadd.f32 %v648, %v618
        %v650 = vadd.f32 %v649, %v619
        %v651 = vadd.f32 %v650, %v620
        %v652 = vadd.f32 %v651, %v621
        %v653 = vadd.f32 %v652, %v622
        %v654 = vadd.f32 %v653, %v623
        %v655 = vadd.f32 %v654, %v624
        %v656 = vrot.slane %v655, 4
        %v657 = vadd.f32 %v655, %v656
        %v658 = vrot.slane %v657, 2
        %v659 = vadd.f32 %v657, %v658
        %v660 = vrot.slane %v659, 1
        %v661 = vadd.f32 %v659, %v660
        %v662 = vadd.f32 %v592, %v661
        %663 = vst [vmem:[#allocation10] sm:$0x1] %v662
        %s664 = sand.u32 %s79, 1
        %s665 = scalar_lea.sflag [#allocation4], %s664
        %s666 = sand.u32 %s79, 1
        %s667 = smul.addr %s666, 256
        %s668 = scalar_lea.vmem [#allocation7], %s667
        // Predicated region
        $region41: #{tpu_custom_call.1} parent=27 // pred_check
          %p669 = pneg %p89
        $region42: #{tpu_custom_call.1} parent=27 // pred_check_branch
          %671 = sbr.rel (%p669) target = $region44
        $region43: #{tpu_custom_call.1} parent=27 // pred_region
          %s672 = smul.u32 32, %s24
          %674 = vsyncadd %s665, 0
          %s675 = smul.addr %s672, 8
          %s676 = scalar_lea.hbm %s2, %s675
          %s677 = sshll.u32 %s668, 4
          %s678 = int_to_ptr.vmem [resolvable:$true] %s677
          %s679 = sshll.u32 %s676, 4
          %s680 = int_to_ptr.hbm [resolvable:$true] %s679
          %685 = dma.vmem_to_hbm [thread:$0]  %s678, 4096, %s680, %s665, 128, 128, 8
        $region44: #{tpu_custom_call.1} parent=27 // pred_fallthru
          _
        // Predicated region
        $region45: #{tpu_custom_call.1} parent=27 // pred_check
          %p686 = pneg %p110
        $region46: #{tpu_custom_call.1} parent=27 // pred_check_branch
          %688 = sbr.rel (%p686) target = $region48
        $region47: #{tpu_custom_call.1} parent=27 // pred_region
          %690 = vsyncadd [#allocation9], 0
          %s692 = sshll.u32 [#allocation8], 4
          %s693 = int_to_ptr.vmem [resolvable:$true] %s692
          %s694 = sshll.u32 %s3, 4
          %s695 = int_to_ptr.hbm [resolvable:$true] %s694
          %697 = dma.vmem_to_hbm [thread:$0]  %s693, 16, %s695, [#allocation9]
        $region48: #{tpu_custom_call.1} parent=27 // pred_fallthru
          _
        // Predicated region
        $region49: #{tpu_custom_call.1} parent=27 // pred_check
          %p698 = pneg %p131
        $region50: #{tpu_custom_call.1} parent=27 // pred_check_branch
          %700 = sbr.rel (%p698) target = $region52
        $region51: #{tpu_custom_call.1} parent=27 // pred_region
          %702 = vsyncadd [#allocation9], 0
          %s704 = sshll.u32 [#allocation10], 4
          %s705 = int_to_ptr.vmem [resolvable:$true] %s704
          %s706 = sshll.u32 %s4, 4
          %s707 = int_to_ptr.hbm [resolvable:$true] %s706
          %709 = dma.vmem_to_hbm [thread:$0]  %s705, 16, %s707, [#allocation9]
        $region52: #{tpu_custom_call.1} parent=27 // pred_fallthru
          _
        // Predicated region
        $region53: #{tpu_custom_call.1} parent=27 // pred_check
          %p710 = pneg %p110
        $region54: #{tpu_custom_call.1} parent=27 // pred_check_branch
          %712 = sbr.rel (%p710) target = $region56
        $region55: #{tpu_custom_call.1} parent=27 // pred_region
          %714 = dma.done [#allocation9], 16
        $region56: #{tpu_custom_call.1} parent=27 // pred_fallthru
          _
        // Predicated region
        $region57: #{tpu_custom_call.1} parent=27 // pred_check
          %p715 = pneg %p131
        $region58: #{tpu_custom_call.1} parent=27 // pred_check_branch
          %717 = sbr.rel (%p715) target = $region60
        $region59: #{tpu_custom_call.1} parent=27 // pred_region
          %719 = dma.done [#allocation9], 16
        $region60: #{tpu_custom_call.1} parent=27 // pred_fallthru
          _
      $region28: #{tpu_custom_call.1} parent=5 // pred_fallthru
        _
      %p720 = scmp.le.s32.totalorder 2, %s19
      // Predicated region
      $region61: #{tpu_custom_call.1} parent=5 // pred_check
        %p721 = pneg %p720
      $region62: #{tpu_custom_call.1} parent=5 // pred_check_branch
        %723 = sbr.rel (%p721) target = $region64
      $region63: #{tpu_custom_call.1} parent=5 // pred_region
        %s724 = ssub.s32 %s19, 2
        // Predicated region
        $region65: #{tpu_custom_call.1} parent=63 // pred_check
          %p725 = pneg %p95
        $region66: #{tpu_custom_call.1} parent=63 // pred_check_branch
          %727 = sbr.rel (%p725) target = $region68
        $region67: #{tpu_custom_call.1} parent=63 // pred_region
          %s728 = sand.u32 %s80, 1
          %s729 = scalar_lea.sflag [#allocation4], %s728
          %s730 = sand.u32 %s80, 1
          %s731 = smul.addr %s730, 256
          %s732 = scalar_lea.vmem [#allocation7], %s731
          %734 = dma.done %s729, 4096
        $region68: #{tpu_custom_call.1} parent=63 // pred_fallthru
          _
      $region64: #{tpu_custom_call.1} parent=5 // pred_fallthru
        _
    $region6: #{tpu_custom_call.1} parent=1 // loop_footer
      %s23 = sadd.s32 1, %s19
    $region7: #{tpu_custom_call.1} parent=1 // loop_footer_branch
      %18 = sbr.rel target = $region3
    $region8: #{tpu_custom_call.1} parent=1 // loop_exit
      _
    %735 = vsyncpa [#allocation3], 1
    %s736 = scalar_lea.sflag [#allocation3], 1
    %737 = vsyncpa %s736, 1
    %738 = vsyncpa [#allocation6], 1
    %739 = vsyncpa [#allocation4], 1
    %s740 = scalar_lea.sflag [#allocation4], 1
    %741 = vsyncpa %s740, 1
    %742 = vsyncpa [#allocation9], 1

</llo_original>
